<compile_context>
chip_gen: v6e
topology: v6e:2x2x1
jax: 0.10.0
libtpu: 0.0.40
codegen_flags: <defaults>
</compile_context>

<pallas_src>
import functools
import math

import jax
import jax.numpy as jnp
from jax.experimental import pallas as pl
from jax.experimental.pallas import tpu as pltpu

LANE = 128
_MAX_BLOCK_ELEMS = 1 << 20          # ~1M elems => ~4 MiB f32 per input per buffer
_VMEM_LIMIT_BYTES = 32 * 1024 * 1024


def _dice_focal_kernel(x_ref, t_ref, inter_ref, psum_ref, tsum_ref, focal_ref,
                       *, alpha, gamma, eps, hw, tile_hw, needs_mask,
                       binary_targets):
    i = pl.program_id(1)            # hw (reduction) axis

    @pl.when(i == 0)
    def _init():
        inter_ref[...] = jnp.zeros_like(inter_ref)
        psum_ref[...] = jnp.zeros_like(psum_ref)
        tsum_ref[...] = jnp.zeros_like(tsum_ref)
        focal_ref[...] = jnp.zeros_like(focal_ref)

    def accumulate(x, t, valid):
        # Stable log-sigmoid: log p = min(x,0) - log(1 + exp(-|x|));
        # log(1-p) = log p - x (exact identity); p = exp(log p).
        log_p = jnp.minimum(x, 0.0) - jnp.log(1.0 + jnp.exp(-jnp.abs(x)))
        log_1mp = log_p - x
        p = jnp.exp(log_p)                      # unclipped sigmoid (Dice path)

        # ---- Dice partial sums (per row) ----
        inter_ref[...] += jnp.sum(p * t, axis=1, keepdims=True)
        p_src = p if valid is None else jnp.where(valid, p, 0.0)
        psum_ref[...] += jnp.sum(p_src, axis=1, keepdims=True)
        tsum_ref[...] += jnp.sum(t, axis=1, keepdims=True)

        # ---- Focal loss (torch: probs clamped to [eps, 1-eps]) ----
        log_eps = math.log(eps)
        log_1meps = math.log1p(-eps)
        p_c = jnp.clip(p, eps, 1.0 - eps)
        log_p_c = jnp.clip(log_p, log_eps, log_1meps)
        log_1mp_c = jnp.clip(log_1mp, log_eps, log_1meps)

        if binary_targets:
            # select form — exact for hard 0/1 labels, saves ~6-8 VPU ops/elem
            tb = t >= 0.5
            one_m_pt = jnp.where(tb, 1.0 - p_c, p_c)
            alpha_t = jnp.where(tb, jnp.float32(alpha), jnp.float32(1.0 - alpha))
            bce = -jnp.where(tb, log_p_c, log_1mp_c)
        else:
            # exact multiplicative form (supports soft labels)
            pt = p_c * t + (1.0 - p_c) * (1.0 - t)
            one_m_pt = 1.0 - pt
            alpha_t = alpha * t + (1.0 - alpha) * (1.0 - t)
            bce = -(t * log_p_c + (1.0 - t) * log_1mp_c)

        if gamma == 2.0:
            fweight = one_m_pt * one_m_pt        # avoid exp/log-based pow
        elif gamma == 1.0:
            fweight = one_m_pt
        else:
            fweight = jnp.power(one_m_pt, jnp.float32(gamma))

        floss = alpha_t * fweight * bce
        if valid is not None:
            floss = jnp.where(valid, floss, 0.0)
        focal_ref[...] += jnp.sum(floss, axis=1, keepdims=True)

    x = x_ref[...].astype(jnp.float32)
    t = t_ref[...].astype(jnp.float32)

    if needs_mask:
        n_hw = pl.num_programs(1)

        @pl.when(i < n_hw - 1)
        def _full_tiles():
            accumulate(x, t, None)

        @pl.when(i == n_hw - 1)
        def _tail_tile():
            # Mask BEFORE any exp/log so OOB garbage (possibly NaN/Inf) in the
            # partially-read last block never reaches the math.
            col = jax.lax.broadcasted_iota(jnp.int32, x.shape, 1) + i * tile_hw
            valid = col < hw
            accumulate(jnp.where(valid, x, 0.0), jnp.where(valid, t, 0.0), valid)
    else:
        accumulate(x, t, None)


def dice_focal_loss(inputs, targets, *, dice_weight=1.0, focal_weight=1.0,
                    alpha=0.8, gamma=2.0, smooth=1e-6, eps=1e-4,
                    binary_targets=True):
    """JAX/Pallas equivalent of DiceFocalLoss.forward (focal reduction='mean').

    Set binary_targets=False for soft labels (exact multiplicative focal form).
    Inputs/targets stream in their native dtype (bf16/uint8 targets are fine).
    """
    assert inputs.shape == targets.shape
    assert inputs.ndim == 4, "expected NCHW inputs"
    B, C, H, W = inputs.shape
    BC, HW = B * C, H * W
    n_elems = BC * HW

    # ---- sublane-occupancy fold: ensure the row axis has >= 8 rows ----
    fold = 1
    if BC < 8 and HW > 1:
        want = -(-8 // BC)
        best_any = None
        for r in range(want, min(HW, 128) + 1):
            if HW % r == 0:
                if best_any is None:
                    best_any = r
                if (BC * r) % 8 == 0:
                    fold = r
                    break
        else:
            if best_any is not None:
                fold = best_any
    rows = BC * fold
    hw_r = HW // fold

    # Pure views: no padding pass, no dtype upcast pass in HBM.
    x2 = inputs.reshape(rows, hw_r)
    t2 = targets.reshape(rows, hw_r)

    hw_padded = pl.cdiv(hw_r, LANE) * LANE

    # ---- row (sublane) tile: multiple of 8 dividing `rows` (or the full dim) ----
    if rows % 8 == 0:
        # Keep >= 2 row tiles when possible so the parallel axis feeds both
        # TensorCores on v7x, and bound rows so a (tile_bc, 128) block never
        # blows past the per-block element budget for huge B*C.
        max_tile = rows if rows < 16 else rows // 2
        cap = min(max_tile, max(8, _MAX_BLOCK_ELEMS // hw_padded))
        cap = max(8, (cap // 8) * 8)
        tile_bc = 8
        for cand in range(cap, 7, -8):
            if rows % cand == 0:
                tile_bc = cand
                break
    else:
        tile_bc = rows               # full-dim row block (allowed by (8,128) rule)
    n_row_tiles = rows // tile_bc

    # ---- hw (lane) tile: as large as the element budget allows ----
    tile_hw = max(LANE, (_MAX_BLOCK_ELEMS // tile_bc) // LANE * LANE)
    if tile_hw >= hw_padded:
        tile_hw = hw_r               # single full-width block: no tail masking
        n_hw_tiles = 1
        needs_mask = False
    else:
        n_hw_tiles = pl.cdiv(hw_r, tile_hw)
        needs_mask = (hw_r % tile_hw) != 0

    kernel = functools.partial(
        _dice_focal_kernel,
        alpha=float(alpha), gamma=float(gamma), eps=float(eps),
        hw=hw_r, tile_hw=tile_hw, needs_mask=needs_mask,
        binary_targets=bool(binary_targets))

    in_spec = pl.BlockSpec((tile_bc, tile_hw), lambda b, i: (b, i))
    acc_spec = pl.BlockSpec((tile_bc, 1), lambda b, i: (b, 0))
    acc_shape = jax.ShapeDtypeStruct((rows, 1), jnp.float32)

    cost = pl.CostEstimate(
        flops=32 * n_elems,
        transcendentals=3 * n_elems,
        bytes_accessed=int(inputs.size) * inputs.dtype.itemsize
        + int(targets.size) * targets.dtype.itemsize
        + 4 * rows * 4,
    )

    inter, psum, tsum, fsum = pl.pallas_call(
        kernel,
        out_shape=(acc_shape, acc_shape, acc_shape, acc_shape),
        grid_spec=pltpu.PrefetchScalarGridSpec(
            num_scalar_prefetch=0,
            grid=(n_row_tiles, n_hw_tiles),
            in_specs=[in_spec, in_spec],
            out_specs=(acc_spec, acc_spec, acc_spec, acc_spec),
        ),
        compiler_params=pltpu.CompilerParams(
            dimension_semantics=("parallel", "arbitrary"),
            vmem_limit_bytes=_VMEM_LIMIT_BYTES),
        cost_estimate=cost,
    )(x2, t2)

    # ---- tiny final combination (un-fold rows back to B*C channels) ----
    inter = inter.reshape(BC, fold).sum(axis=1)
    psum = psum.reshape(BC, fold).sum(axis=1)
    tsum = tsum.reshape(BC, fold).sum(axis=1)
    union = psum + tsum
    dice = (2.0 * inter + smooth) / (union + smooth)
    dice_loss = jnp.mean(1.0 - dice)
    focal_mean = jnp.sum(fsum) / jnp.float32(n_elems)
    return dice_weight * dice_loss + focal_weight * focal_mean


def _dice_focal_ref(inputs, targets, dice_weight=1.0, focal_weight=1.0,
                    alpha=0.8, gamma=2.0, smooth=1e-6, eps=1e-4):
    """Pure-JAX mirror of the PyTorch DiceFocalLoss math."""
    x = inputs.astype(jnp.float32)
    t = targets.astype(jnp.float32)
    p = jax.nn.sigmoid(x)
    inter = jnp.sum(p * t, axis=(2, 3))
    union = jnp.sum(p, axis=(2, 3)) + jnp.sum(t, axis=(2, 3))
    dice = (2.0 * inter + smooth) / (union + smooth)
    dice_loss = jnp.mean(1.0 - dice)

    pc = jnp.clip(p, eps, 1.0 - eps)
    pt = pc * t + (1.0 - pc) * (1.0 - t)
    fw = (1.0 - pt) ** gamma
    at = alpha * t + (1.0 - alpha) * (1.0 - t)
    bce = -(t * jnp.log(pc) + (1.0 - t) * jnp.log(1.0 - pc))
    focal = jnp.mean(at * fw * bce)
    return dice_weight * dice_loss + focal_weight * focal


if __name__ == "__main__":
    key = jax.random.PRNGKey(0)
    k1, k2, k3, k4 = jax.random.split(key, 4)

    # Test 1: standard NCHW, hard 0/1 targets (B*C = 8 rows, HW = 256 lanes).
    B, C, H, W = 2, 4, 16, 16
    logits = jax.random.normal(k1, (B, C, H, W), dtype=jnp.float32)
    labels = (jax.random.uniform(k2, (B, C, H, W)) > 0.5).astype(jnp.float32)
    out = jax.block_until_ready(dice_focal_loss(logits, labels))
    ref = _dice_focal_ref(logits, labels)
    assert jnp.allclose(out, ref, rtol=1e-5, atol=1e-6), (out, ref)

    # Test 2: B*C < 8 exercises the sublane-occupancy fold (rows 2 -> 8).
    logits2 = jax.random.normal(k3, (1, 2, 16, 16), dtype=jnp.float32)
    labels2 = (jax.random.uniform(k4, (1, 2, 16, 16)) > 0.5).astype(jnp.float32)
    out2 = jax.block_until_ready(dice_focal_loss(logits2, labels2))
    ref2 = _dice_focal_ref(logits2, labels2)
    assert jnp.allclose(out2, ref2, rtol=1e-5, atol=1e-6), (out2, ref2)

    # Test 3: soft targets use the exact multiplicative focal formula.
    soft = jax.random.uniform(k2, (B, C, H, W), dtype=jnp.float32)
    out3 = jax.block_until_ready(
        dice_focal_loss(logits, soft, binary_targets=False))
    ref3 = _dice_focal_ref(logits, soft)
    assert jnp.allclose(out3, ref3, rtol=1e-5, atol=1e-6), (out3, ref3)

    print("KERNEL_OK")
</pallas_src>

<mosaic_0001>
module attributes {stable_mosaic.version = 11 : i64} {
  func.func @_dice_focal_kernel(%arg0: i32, %arg1: i32, %arg2: memref<8x256xf32, #tpu.memory_space<vmem>>, %arg3: memref<8x256xf32, #tpu.memory_space<vmem>>, %arg4: memref<8x1xf32, #tpu.memory_space<vmem>>, %arg5: memref<8x1xf32, #tpu.memory_space<vmem>>, %arg6: memref<8x1xf32, #tpu.memory_space<vmem>>, %arg7: memref<8x1xf32, #tpu.memory_space<vmem>>) attributes {dimension_semantics = [#tpu.dimension_semantics<parallel>, #tpu.dimension_semantics<arbitrary>], iteration_bounds = array<i64: 1, 1>, scalar_prefetch = 0 : i64, scratch_operands = 0 : i64, tpu.core_type = #tpu.core_type<tc>, window_params = [{transform_indices = @transform_0, window_bounds = array<i64: 8, 256>}, {transform_indices = @transform_1, window_bounds = array<i64: 8, 256>}, {transform_indices = @transform_2, window_bounds = array<i64: 8, 1>}, {transform_indices = @transform_3, window_bounds = array<i64: 8, 1>}, {transform_indices = @transform_4, window_bounds = array<i64: 8, 1>}, {transform_indices = @transform_5, window_bounds = array<i64: 8, 1>}]} {
    %c0_i32 = arith.constant 0 : i32
    %0 = arith.cmpi eq, %arg1, %c0_i32 : i32
    %1 = arith.extui %0 : i1 to i32
    %c0_i32_0 = arith.constant 0 : i32
    %2 = arith.cmpi ne, %1, %c0_i32_0 : i32
    scf.if %2 {
      %cst_37 = arith.constant 0.000000e+00 : f32
      %64 = vector.broadcast %cst_37 : f32 to vector<8x1xf32>
      %c0_38 = arith.constant 0 : index
      %c0_39 = arith.constant 0 : index
      %65 = vector.load %arg4[%c0_38, %c0_39] : memref<8x1xf32, #tpu.memory_space<vmem>>, vector<8x1xf32>
      tpu.vector_store %arg4[%c0_38, %c0_39], %64 {strides = array<i32>} : memref<8x1xf32, #tpu.memory_space<vmem>>, vector<8x1xf32>,
      %cst_40 = arith.constant 0.000000e+00 : f32
      %66 = vector.broadcast %cst_40 : f32 to vector<8x1xf32>
      %c0_41 = arith.constant 0 : index
      %c0_42 = arith.constant 0 : index
      %67 = vector.load %arg5[%c0_41, %c0_42] : memref<8x1xf32, #tpu.memory_space<vmem>>, vector<8x1xf32>
      tpu.vector_store %arg5[%c0_41, %c0_42], %66 {strides = array<i32>} : memref<8x1xf32, #tpu.memory_space<vmem>>, vector<8x1xf32>,
      %cst_43 = arith.constant 0.000000e+00 : f32
      %68 = vector.broadcast %cst_43 : f32 to vector<8x1xf32>
      %c0_44 = arith.constant 0 : index
      %c0_45 = arith.constant 0 : index
      %69 = vector.load %arg6[%c0_44, %c0_45] : memref<8x1xf32, #tpu.memory_space<vmem>>, vector<8x1xf32>
      tpu.vector_store %arg6[%c0_44, %c0_45], %68 {strides = array<i32>} : memref<8x1xf32, #tpu.memory_space<vmem>>, vector<8x1xf32>,
      %cst_46 = arith.constant 0.000000e+00 : f32
      %70 = vector.broadcast %cst_46 : f32 to vector<8x1xf32>
      %c0_47 = arith.constant 0 : index
      %c0_48 = arith.constant 0 : index
      %71 = vector.load %arg7[%c0_47, %c0_48] : memref<8x1xf32, #tpu.memory_space<vmem>>, vector<8x1xf32>
      tpu.vector_store %arg7[%c0_47, %c0_48], %70 {strides = array<i32>} : memref<8x1xf32, #tpu.memory_space<vmem>>, vector<8x1xf32>,
    } else {
    }
    %c0 = arith.constant 0 : index
    %c0_1 = arith.constant 0 : index
    %3 = vector.load %arg2[%c0, %c0_1] : memref<8x256xf32, #tpu.memory_space<vmem>>, vector<8x256xf32>
    %c0_2 = arith.constant 0 : index
    %c0_3 = arith.constant 0 : index
    %4 = vector.load %arg3[%c0_2, %c0_3] : memref<8x256xf32, #tpu.memory_space<vmem>>, vector<8x256xf32>
    %cst = arith.constant 0.000000e+00 : f32
    %5 = vector.broadcast %cst : f32 to vector<8x256xf32>
    %6 = arith.minimumf %3, %5 : vector<8x256xf32>
    %7 = math.absf %3 : vector<8x256xf32>
    %cst_4 = arith.constant 0.000000e+00 : f32
    %8 = vector.broadcast %cst_4 : f32 to vector<8x256xf32>
    %9 = arith.subf %8, %7 : vector<8x256xf32>
    %10 = math.exp %9 : vector<8x256xf32>
    %cst_5 = arith.constant 1.000000e+00 : f32
    %11 = vector.broadcast %cst_5 : f32 to vector<8x256xf32>
    %12 = arith.addf %11, %10 : vector<8x256xf32>
    %13 = math.log %12 : vector<8x256xf32>
    %14 = arith.subf %6, %13 : vector<8x256xf32>
    %15 = arith.subf %14, %3 : vector<8x256xf32>
    %16 = math.exp %14 : vector<8x256xf32>
    %c0_6 = arith.constant 0 : index
    %c0_7 = arith.constant 0 : index
    %17 = vector.load %arg4[%c0_6, %c0_7] : memref<8x1xf32, #tpu.memory_space<vmem>>, vector<8x1xf32>
    %18 = arith.mulf %16, %4 : vector<8x256xf32>
    %cst_8 = arith.constant dense<0.000000e+00> : vector<8xf32>
    %19 = vector.multi_reduction <add>, %18, %cst_8 [1] : vector<8x256xf32> to vector<8xf32>
    %20 = vector.shape_cast %19 : vector<8xf32> to vector<8x1xf32>
    %21 = arith.addf %17, %20 : vector<8x1xf32>
    %c0_9 = arith.constant 0 : index
    %c0_10 = arith.constant 0 : index
    %22 = vector.load %arg4[%c0_9, %c0_10] : memref<8x1xf32, #tpu.memory_space<vmem>>, vector<8x1xf32>
    tpu.vector_store %arg4[%c0_9, %c0_10], %21 {strides = array<i32>} : memref<8x1xf32, #tpu.memory_space<vmem>>, vector<8x1xf32>,
    %c0_11 = arith.constant 0 : index
    %c0_12 = arith.constant 0 : index
    %23 = vector.load %arg5[%c0_11, %c0_12] : memref<8x1xf32, #tpu.memory_space<vmem>>, vector<8x1xf32>
    %cst_13 = arith.constant dense<0.000000e+00> : vector<8xf32>
    %24 = vector.multi_reduction <add>, %16, %cst_13 [1] : vector<8x256xf32> to vector<8xf32>
    %25 = vector.shape_cast %24 : vector<8xf32> to vector<8x1xf32>
    %26 = arith.addf %23, %25 : vector<8x1xf32>
    %c0_14 = arith.constant 0 : index
    %c0_15 = arith.constant 0 : index
    %27 = vector.load %arg5[%c0_14, %c0_15] : memref<8x1xf32, #tpu.memory_space<vmem>>, vector<8x1xf32>
    tpu.vector_store %arg5[%c0_14, %c0_15], %26 {strides = array<i32>} : memref<8x1xf32, #tpu.memory_space<vmem>>, vector<8x1xf32>,
    %c0_16 = arith.constant 0 : index
    %c0_17 = arith.constant 0 : index
    %28 = vector.load %arg6[%c0_16, %c0_17] : memref<8x1xf32, #tpu.memory_space<vmem>>, vector<8x1xf32>
    %cst_18 = arith.constant dense<0.000000e+00> : vector<8xf32>
    %29 = vector.multi_reduction <add>, %4, %cst_18 [1] : vector<8x256xf32> to vector<8xf32>
    %30 = vector.shape_cast %29 : vector<8xf32> to vector<8x1xf32>
    %31 = arith.addf %28, %30 : vector<8x1xf32>
    %c0_19 = arith.constant 0 : index
    %c0_20 = arith.constant 0 : index
    %32 = vector.load %arg6[%c0_19, %c0_20] : memref<8x1xf32, #tpu.memory_space<vmem>>, vector<8x1xf32>
    tpu.vector_store %arg6[%c0_19, %c0_20], %31 {strides = array<i32>} : memref<8x1xf32, #tpu.memory_space<vmem>>, vector<8x1xf32>,
    %cst_21 = arith.constant 9.99999974E-5 : f32
    %cst_22 = arith.constant 0.999899983 : f32
    %33 = vector.broadcast %cst_21 : f32 to vector<8x256xf32>
    %34 = arith.maximumf %33, %16 : vector<8x256xf32>
    %35 = vector.broadcast %cst_22 : f32 to vector<8x256xf32>
    %36 = arith.minimumf %35, %34 : vector<8x256xf32>
    %cst_23 = arith.constant -9.21034049 : f32
    %cst_24 = arith.constant -1.000050e-04 : f32
    %37 = vector.broadcast %cst_23 : f32 to vector<8x256xf32>
    %38 = arith.maximumf %37, %14 : vector<8x256xf32>
    %39 = vector.broadcast %cst_24 : f32 to vector<8x256xf32>
    %40 = arith.minimumf %39, %38 : vector<8x256xf32>
    %cst_25 = arith.constant -9.21034049 : f32
    %cst_26 = arith.constant -1.000050e-04 : f32
    %41 = vector.broadcast %cst_25 : f32 to vector<8x256xf32>
    %42 = arith.maximumf %41, %15 : vector<8x256xf32>
    %43 = vector.broadcast %cst_26 : f32 to vector<8x256xf32>
    %44 = arith.minimumf %43, %42 : vector<8x256xf32>
    %cst_27 = arith.constant 5.000000e-01 : f32
    %45 = vector.broadcast %cst_27 : f32 to vector<8x256xf32>
    %46 = arith.cmpf oge, %4, %45 : vector<8x256xf32>
    %cst_28 = arith.constant 1.000000e+00 : f32
    %47 = vector.broadcast %cst_28 : f32 to vector<8x256xf32>
    %48 = arith.subf %47, %36 : vector<8x256xf32>
    %49 = arith.select %46, %48, %36 : vector<8x256xi1>, vector<8x256xf32>
    %cst_29 = arith.constant 8.000000e-01 : f32
    %cst_30 = arith.constant 2.000000e-01 : f32
    %50 = vector.broadcast %cst_29 : f32 to vector<8x256xf32>
    %51 = vector.broadcast %cst_30 : f32 to vector<8x256xf32>
    %52 = arith.select %46, %50, %51 : vector<8x256xi1>, vector<8x256xf32>
    %53 = arith.select %46, %40, %44 : vector<8x256xi1>, vector<8x256xf32>
    %cst_31 = arith.constant 0.000000e+00 : f32
    %54 = vector.broadcast %cst_31 : f32 to vector<8x256xf32>
    %55 = arith.subf %54, %53 : vector<8x256xf32>
    %56 = arith.mulf %49, %49 : vector<8x256xf32>
    %57 = arith.mulf %52, %56 : vector<8x256xf32>
    %58 = arith.mulf %57, %55 : vector<8x256xf32>
    %c0_32 = arith.constant 0 : index
    %c0_33 = arith.constant 0 : index
    %59 = vector.load %arg7[%c0_32, %c0_33] : memref<8x1xf32, #tpu.memory_space<vmem>>, vector<8x1xf32>
    %cst_34 = arith.constant dense<0.000000e+00> : vector<8xf32>
    %60 = vector.multi_reduction <add>, %58, %cst_34 [1] : vector<8x256xf32> to vector<8xf32>
    %61 = vector.shape_cast %60 : vector<8xf32> to vector<8x1xf32>
    %62 = arith.addf %59, %61 : vector<8x1xf32>
    %c0_35 = arith.constant 0 : index
    %c0_36 = arith.constant 0 : index
    %63 = vector.load %arg7[%c0_35, %c0_36] : memref<8x1xf32, #tpu.memory_space<vmem>>, vector<8x1xf32>
    tpu.vector_store %arg7[%c0_35, %c0_36], %62 {strides = array<i32>} : memref<8x1xf32, #tpu.memory_space<vmem>>, vector<8x1xf32>,
    return
  }
  func.func @transform_0(%arg0: i32, %arg1: i32) -> (i32, i32) {
    %c0_i32 = arith.constant 0 : i32
    return %arg0, %arg1 : i32, i32
  }
  func.func @transform_1(%arg0: i32, %arg1: i32) -> (i32, i32) {
    %c0_i32 = arith.constant 0 : i32
    return %arg0, %arg1 : i32, i32
  }
  func.func @transform_2(%arg0: i32, %arg1: i32) -> (i32, i32) {
    %c0_i32 = arith.constant 0 : i32
    %c0_i32_0 = arith.constant 0 : i32
    return %arg0, %c0_i32 : i32, i32
  }
  func.func @transform_3(%arg0: i32, %arg1: i32) -> (i32, i32) {
    %c0_i32 = arith.constant 0 : i32
    %c0_i32_0 = arith.constant 0 : i32
    return %arg0, %c0_i32 : i32, i32
  }
  func.func @transform_4(%arg0: i32, %arg1: i32) -> (i32, i32) {
    %c0_i32 = arith.constant 0 : i32
    %c0_i32_0 = arith.constant 0 : i32
    return %arg0, %c0_i32 : i32, i32
  }
  func.func @transform_5(%arg0: i32, %arg1: i32) -> (i32, i32) {
    %c0_i32 = arith.constant 0 : i32
    %c0_i32_0 = arith.constant 0 : i32
    return %arg0, %c0_i32 : i32, i32
  }
}

</mosaic_0001>

<llo_original>
// kernel: tpu_custom_call.1
$region0: #{tpu_custom_call.1}
  #allocation0 [shape = 'u32[]', space=smem, size = 0x4, offset = 0x4, fixed_abs, tag = 'smem constant byte address 0x4 - core index']
  #allocation1 [shape = 'u32[144,128]{1,0:T(1,128)}', space=vmem, size = 0x12000, scoped, tag = 'internal scratch']
  %s0 = inlined_call_operand.hbm [shape: f32[8,256], index: 0, kind: input, shape index: {}]
  %s1 = inlined_call_operand.hbm [shape: f32[8,256], index: 1, kind: input, shape index: {}]
  %s2 = inlined_call_operand.vmem [shape: f32[8,1], index: 2, kind: output, shape index: {0}]
  %s3 = inlined_call_operand.vmem [shape: f32[8,1], index: 3, kind: output, shape index: {1}]
  %s4 = inlined_call_operand.vmem [shape: f32[8,1], index: 4, kind: output, shape index: {2}]
  %s5 = inlined_call_operand.vmem [shape: f32[8,1], index: 5, kind: output, shape index: {3}]
  %6 = xla_tuple %s2, %s3, %s4, %s5
  %s7 = sld [smem:[#allocation0]]
  $region54: #{tpu_custom_call.1} parent=0
    _
  %s9 = ssub.s32 1, %s7
  %s10 = scalar_select 0, %s9, %s7
  $region1: #{tpu_custom_call.1} parent=0
    #allocation2 [shape = 'u8[8192]{0}', space=vmem, size = 0x2000, scoped, tag = 'input window, operand 0, single buffered']
    #allocation3 [shape = 's32[1]{0}', space=sflag, size = 0x4, scoped, tag = 'scoped memory for tpu_custom_call.1']
    #allocation4 [shape = 'u8[8192]{0}', space=vmem, size = 0x2000, scoped, tag = 'input window, operand 1, single buffered']
    #allocation5 [shape = 's32[1]{0}', space=sflag, size = 0x4, scoped, tag = 'scoped memory for tpu_custom_call.1']
    %11 = vsyncpa [#allocation3], 0
    %12 = vsyncpa [#allocation5], 0
    // Predicated region
    $region2: #{tpu_custom_call.1} parent=1 // pred_check
      _
    $region3: #{tpu_custom_call.1} parent=1 // pred_check_branch
      %14 = sbr.rel (0) target = $region5
    $region4: #{tpu_custom_call.1} parent=1 // pred_region
      %s16 = ssub.s32 256, 256
      %17 = vsyncadd [#allocation3], %s16
      %s19 = sshll.u32 [#allocation2], 4
      %s20 = int_to_ptr.vmem [resolvable:$true] %s19
      %22 = dma.hbm_to_vmem [thread:$0]  %s0, 256, %s20, [#allocation3]
    $region5: #{tpu_custom_call.1} parent=1 // pred_fallthru
      _
    // Predicated region
    $region6: #{tpu_custom_call.1} parent=1 // pred_check
      _
    $region7: #{tpu_custom_call.1} parent=1 // pred_check_branch
      %24 = sbr.rel (0) target = $region9
    $region8: #{tpu_custom_call.1} parent=1 // pred_region
      %s26 = ssub.s32 256, 256
      %27 = vsyncadd [#allocation5], %s26
      %s29 = sshll.u32 [#allocation4], 4
      %s30 = int_to_ptr.vmem [resolvable:$true] %s29
      %32 = dma.hbm_to_vmem [thread:$0]  %s1, 256, %s30, [#allocation5]
    $region9: #{tpu_custom_call.1} parent=1 // pred_fallthru
      _
    // Predicated region
    $region10: #{tpu_custom_call.1} parent=1 // pred_check
      _
    $region11: #{tpu_custom_call.1} parent=1 // pred_check_branch
      %34 = sbr.rel (0) target = $region13
    $region12: #{tpu_custom_call.1} parent=1 // pred_region
      %35 = dma.done [#allocation3], 256
    $region13: #{tpu_custom_call.1} parent=1 // pred_fallthru
      _
    // Predicated region
    $region14: #{tpu_custom_call.1} parent=1 // pred_check
      _
    $region15: #{tpu_custom_call.1} parent=1 // pred_check_branch
      %37 = sbr.rel (0) target = $region17
    $region16: #{tpu_custom_call.1} parent=1 // pred_region
      %38 = dma.done [#allocation5], 256
    $region17: #{tpu_custom_call.1} parent=1 // pred_fallthru
      _
    %p39 = scmp.eq.s32.totalorder 0, 0
    // Predicated region
    $region18: #{tpu_custom_call.1} parent=1 // pred_check
      %p40 = pneg %p39
    $region19: #{tpu_custom_call.1} parent=1 // pred_check_branch
      %42 = sbr.rel (%p40) target = $region21
    $region20: #{tpu_custom_call.1} parent=1 // pred_region
      %vm43 = vcmask 7168
      %44 = vst.msk [vmem:[%s2] sm:$0xff] %vm43, 0.0
      %45 = vst.msk [vmem:[%s3] sm:$0xff] %vm43, 0.0
      %46 = vst.msk [vmem:[%s4] sm:$0xff] %vm43, 0.0
      %47 = vst.msk [vmem:[%s5] sm:$0xff] %vm43, 0.0
    $region21: #{tpu_custom_call.1} parent=1 // pred_fallthru
      _
    %v48 = vld [vmem:[#allocation2] sm:$0xff]
    %v49 = vld [vmem:[#allocation2 + $0x8] sm:$0xff]
    %v50 = vld [vmem:[#allocation4] sm:$0xff]
    %v51 = vld [vmem:[#allocation4 + $0x8] sm:$0xff]
    %v52 = vmin.f32 %v48, 0.0
    %v53 = vmin.f32 %v49, 0.0
    %v54 = vand.u32 2147483647, %v48
    %v55 = vand.u32 2147483647, %v49
    %v56 = vsub.f32 0.0, %v54
    %v57 = vsub.f32 0.0, %v55
    %v58 = vmul.f32 %v56, 1.442695
    %v59 = vpow.pop %v58
    %v60 = vmul.f32 %v57, 1.442695
    %v61 = vpow.pop %v60
    %v62 = vadd.f32 %v59, 1.0
    %v63 = vadd.f32 %v61, 1.0
    %v64 = vlog2.pop %v62
    %v65 = vmul.f32 %v64, 0.6931472
    %v66 = vlog2.pop %v63
    %v67 = vmul.f32 %v66, 0.6931472
    %v68 = vsub.f32 %v52, %v65
    %v69 = vsub.f32 %v53, %v67
    %v70 = vsub.f32 %v68, %v48
    %v71 = vsub.f32 %v69, %v49
    %v72 = vmul.f32 %v68, 1.442695
    %v73 = vpow.pop %v72
    %v74 = vmul.f32 %v69, 1.442695
    %v75 = vpow.pop %v74
    %v76 = vld [vmem:[%s2] sm:$0xff]
    %v77 = vmul.f32 %v73, %v50
    %v78 = vmul.f32 %v75, %v51
    %v79 = vadd.f32 %v77, %v78
    %80 = vadd.xlane.f32.xlu0 %v79
    %v81 = vpop.xlane.xlu0 %80
    %v82 = vadd.f32 %v76, %v81
    %vm83 = vcmask 7168
    %84 = vst.msk [vmem:[%s2] sm:$0xff] %vm83, %v82
    %v85 = vld [vmem:[%s3] sm:$0xff]
    %v86 = vadd.f32 %v73, %v75
    %87 = vadd.xlane.f32.xlu0 %v86
    %v88 = vpop.xlane.xlu0 %87
    %v89 = vadd.f32 %v85, %v88
    %90 = vst.msk [vmem:[%s3] sm:$0xff] %vm83, %v89
    %v91 = vld [vmem:[%s4] sm:$0xff]
    %v92 = vadd.f32 %v50, %v51
    %93 = vadd.xlane.f32.xlu0 %v92
    %v94 = vpop.xlane.xlu0 %93
    %v95 = vadd.f32 %v91, %v94
    %96 = vst.msk [vmem:[%s4] sm:$0xff] %vm83, %v95
    %v97 = vmax.f32 %v73, 0.0001
    %v98 = vmax.f32 %v75, 0.0001
    %v99 = vmin.f32 %v97, 0.9999
    %v100 = vmin.f32 %v98, 0.9999
    %v101 = vmax.f32 %v68, -9.2103405
    %v102 = vmax.f32 %v69, -9.2103405
    %v103 = vmin.f32 %v101, -0.000100005
    %v104 = vmin.f32 %v102, -0.000100005
    %v105 = vmax.f32 %v70, -9.2103405
    %v106 = vmax.f32 %v71, -9.2103405
    %v107 = vmin.f32 %v105, -0.000100005
    %v108 = vmin.f32 %v106, -0.000100005
    %vm109 = vcmp.ge.f32.partialorder %v50, 0.5
    %vm110 = vcmp.ge.f32.partialorder %v51, 0.5
    %v111 = vsub.f32 1.0, %v99
    %v112 = vsub.f32 1.0, %v100
    %v113 = vsel %vm109, %v111, %v99
    %v114 = vsel %vm110, %v112, %v100
    %v115 = vsel %vm109, 0.8, 0.2
    %v116 = vsel %vm110, 0.8, 0.2
    %v117 = vsel %vm109, %v103, %v107
    %v118 = vsel %vm110, %v104, %v108
    %v119 = vsub.f32 0.0, %v117
    %v120 = vsub.f32 0.0, %v118
    %v121 = vmul.f32 %v113, %v113
    %v122 = vmul.f32 %v114, %v114
    %v123 = vmul.f32 %v115, %v121
    %v124 = vmul.f32 %v116, %v122
    %v125 = vmul.f32 %v123, %v119
    %v126 = vmul.f32 %v124, %v120
    %v127 = vld [vmem:[%s5] sm:$0xff]
    %v128 = vadd.f32 %v125, %v126
    %129 = vadd.xlane.f32.xlu0 %v128
    %v130 = vpop.xlane.xlu0 %129
    %v131 = vadd.f32 %v127, %v130
    %132 = vst.msk [vmem:[%s5] sm:$0xff] %vm83, %v131
    // Predicated region
    $region22: #{tpu_custom_call.1} parent=1 // pred_check
      _
    $region23: #{tpu_custom_call.1} parent=1 // pred_check_branch
      %134 = sbr.rel (0) target = $region25
    $region24: #{tpu_custom_call.1} parent=1 // pred_region
      _
    $region25: #{tpu_custom_call.1} parent=1 // pred_fallthru
      _
    // Predicated region
    $region26: #{tpu_custom_call.1} parent=1 // pred_check
      _
    $region27: #{tpu_custom_call.1} parent=1 // pred_check_branch
      %136 = sbr.rel (0) target = $region29
    $region28: #{tpu_custom_call.1} parent=1 // pred_region
      _
    $region29: #{tpu_custom_call.1} parent=1 // pred_fallthru
      _
    // Predicated region
    $region30: #{tpu_custom_call.1} parent=1 // pred_check
      _
    $region31: #{tpu_custom_call.1} parent=1 // pred_check_branch
      %138 = sbr.rel (0) target = $region33
    $region32: #{tpu_custom_call.1} parent=1 // pred_region
      _
    $region33: #{tpu_custom_call.1} parent=1 // pred_fallthru
      _
    // Predicated region
    $region34: #{tpu_custom_call.1} parent=1 // pred_check
      _
    $region35: #{tpu_custom_call.1} parent=1 // pred_check_branch
      %140 = sbr.rel (0) target = $region37
    $region36: #{tpu_custom_call.1} parent=1 // pred_region
      _
    $region37: #{tpu_custom_call.1} parent=1 // pred_fallthru
      _
    // Predicated region
    $region38: #{tpu_custom_call.1} parent=1 // pred_check
      _
    $region39: #{tpu_custom_call.1} parent=1 // pred_check_branch
      %142 = sbr.rel (0) target = $region41
    $region40: #{tpu_custom_call.1} parent=1 // pred_region
      _
    $region41: #{tpu_custom_call.1} parent=1 // pred_fallthru
      _
    // Predicated region
    $region42: #{tpu_custom_call.1} parent=1 // pred_check
      _
    $region43: #{tpu_custom_call.1} parent=1 // pred_check_branch
      %144 = sbr.rel (0) target = $region45
    $region44: #{tpu_custom_call.1} parent=1 // pred_region
      _
    $region45: #{tpu_custom_call.1} parent=1 // pred_fallthru
      _
    // Predicated region
    $region46: #{tpu_custom_call.1} parent=1 // pred_check
      _
    $region47: #{tpu_custom_call.1} parent=1 // pred_check_branch
      %146 = sbr.rel (0) target = $region49
    $region48: #{tpu_custom_call.1} parent=1 // pred_region
      _
    $region49: #{tpu_custom_call.1} parent=1 // pred_fallthru
      _
    // Predicated region
    $region50: #{tpu_custom_call.1} parent=1 // pred_check
      _
    $region51: #{tpu_custom_call.1} parent=1 // pred_check_branch
      %148 = sbr.rel (0) target = $region53
    $region52: #{tpu_custom_call.1} parent=1 // pred_region
      _
    $region53: #{tpu_custom_call.1} parent=1 // pred_fallthru
      _
    %149 = vsyncpa [#allocation3], 1
    %150 = vsyncpa [#allocation5], 1

</llo_original>
